<compile_context>
chip_gen: v7x
topology: tpu7x:2x2x1
jax: 0.10.0
libtpu: 0.0.40
codegen_flags: <defaults>
</compile_context>

<pallas_src>
import functools

import jax
import jax.numpy as jnp
from jax import lax
from jax.experimental import pallas as pl
from jax.experimental.pallas import tpu as pltpu

_LANE = 128
_SUBLANE = 8


# ----------------------------------------------------------------------------- helpers


def _round_up(x: int, m: int) -> int:
    return ((x + m - 1) // m) * m


def _cdiv(a: int, b: int) -> int:
    return -(-a // b)


def _sublane_multiple(dtype) -> int:
    # f32 -> 8, bf16 -> 16, int8/fp8 -> 32 (sub-32-bit dtypes pack along sublanes).
    return max(8, 32 // jnp.dtype(dtype).itemsize)


def _vmem_capacity_bytes() -> int:
    try:
        info = pltpu.get_tpu_info()
        cap = getattr(info, "vmem_capacity_bytes", None)
        if cap:
            return int(cap)
    except Exception:
        pass
    return 128 * 1024 * 1024  # conservative default (v5e/v6e-class)


def _vmem_plan():
    """(tile ceiling, row cap, hard cap for vmem_limit_bytes) per generation."""
    cap = _vmem_capacity_bytes()
    if cap <= (96 << 20):                       # v7x-like: 64 MiB VMEM, ~3.2 TB/s HBM
        return 44 << 20, 4096, 56 << 20         # bigger tiles amortize 0.35us/step
    return 28 << 20, 2048, 96 << 20             # v5e / v6e: 128 MiB physical VMEM


def _choose_tiling(batch: int, per_row_bytes: int, tile_budget: int,
                   row_cap: int, sublane: int):
    m = sublane
    tb = (max(tile_budget, per_row_bytes * m) // per_row_bytes) // m * m
    tb = max(m, min(tb, row_cap))
    # keep >= 2 grid steps when there is enough work (use both v7x TensorCores)
    half = _round_up(max(1, _cdiv(batch, 2)), m)
    tb = min(tb, max(m, half))
    n = _cdiv(batch, tb)
    # prefer an even step count: v7x shards the "parallel" axis across 2 cores
    if n > 1 and n % 2 == 1:
        tb = _round_up(_cdiv(batch, n + 1), m)
        n = _cdiv(batch, tb)
    return tb, n


# ----------------------------------------------------------------------------- shared scoring


def _score_rows(h, t, r, *, p_norm, normalize):
    """Score a (rows, D) f32 tile of h/t/r rows -> (rows, 1) f32 ||h + r - t||_p."""
    if normalize:
        # F.normalize(x, 2, -1) == x / max(||x||, 1e-12) == x * rsqrt(max(sumsq, 1e-24));
        # rsqrt rides the EUP slot, which is otherwise idle here.
        eps2 = jnp.float32(1e-24)

        def l2n(x):
            ss = jnp.sum(x * x, axis=-1, keepdims=True)
            return x * lax.rsqrt(jnp.maximum(ss, eps2))

        h, t, r = l2n(h), l2n(t), l2n(r)

    s = h + r - t
    if p_norm == 1:
        return jnp.sum(jnp.abs(s), axis=-1, keepdims=True)
    if p_norm == 2:
        return jnp.sqrt(jnp.sum(s * s, axis=-1, keepdims=True))
    if isinstance(p_norm, int) and 3 <= p_norm <= 8:
        # |s|^p via repeated VALU multiplies (exponentiation by squaring); only the
        # final (rows, 1) root is a transcendental -> no D-per-row exp/log on the EUP.
        a = jnp.abs(s)
        acc, base, e = None, a, p_norm
        while e:
            if e & 1:
                acc = base if acc is None else acc * base
            e >>= 1
            if e:
                base = base * base
        total = jnp.sum(acc, axis=-1, keepdims=True)
        return jnp.power(total, jnp.float32(1.0 / p_norm))
    # General / non-integer p: per-element transcendentals (EUP heavy; avoid if possible).
    p = jnp.float32(p_norm)
    total = jnp.sum(jnp.power(jnp.abs(s), p), axis=-1, keepdims=True)
    return jnp.power(total, jnp.float32(1.0) / p)


# ----------------------------------------------------------------------------- kernels


def _transe_fused_kernel(h_idx, t_idx, r_idx,        # SMEM scalar-prefetch, (b_pad,) i32
                         ent_ref, rel_ref,           # full tables, resident in VMEM
                         out_ref,                    # (tb, 1) f32 scores
                         sh_ref, st_ref, sr_ref,     # (8, D) f32 staging scratch
                         *, p_norm, tb, normalize):
    """Fused gather + normalize + ||h + r - t||_p for one tile of tb rows."""
    f32 = jnp.float32
    base = pl.program_id(0) * tb

    def gather_block(jj, carry):
        j0 = base + jj * 8
        # Static 8-row unroll: dynamic single-row loads from the resident tables,
        # staged via static-index stores (keeps every VMEM store aligned).
        for k in range(8):
            sh_ref[pl.ds(k, 1), :] = ent_ref[pl.ds(h_idx[j0 + k], 1), :].astype(f32)
            st_ref[pl.ds(k, 1), :] = ent_ref[pl.ds(t_idx[j0 + k], 1), :].astype(f32)
            sr_ref[pl.ds(k, 1), :] = rel_ref[pl.ds(r_idx[j0 + k], 1), :].astype(f32)
        score = _score_rows(sh_ref[...], st_ref[...], sr_ref[...],
                            p_norm=p_norm, normalize=normalize)        # (8, 1)
        dst = pl.ds(pl.multiple_of(jj * 8, 8), 8)
        out_ref[dst, :] = score.astype(out_ref.dtype)
        return carry

    lax.fori_loop(0, tb // 8, gather_block, 0)


def _transe_streaming_kernel(h_ref, t_ref, r_ref, out_ref, *, p_norm, normalize):
    """Streaming path: pre-gathered (tb, D) rows in, (tb, 1) scores out."""
    f32 = jnp.float32
    out_ref[...] = _score_rows(
        h_ref[...].astype(f32), t_ref[...].astype(f32), r_ref[...].astype(f32),
        p_norm=p_norm, normalize=normalize,
    ).astype(out_ref.dtype)


# ----------------------------------------------------------------------------- wrapper


def transe_forward(inp, ent_emb, rel_emb, *, p_norm: int = 2, tb: int | None = None,
                   gather_dtype=None, tables_prenormalized: bool = False,
                   fuse_gather: bool | None = None, interpret: bool = False):
    """TransE scores for (batch, 3) [head, tail, rel] triples -> (batch,) float32.

    gather_dtype: streaming-path only; rows are cast AFTER the gather (never the
      whole table).  For persistent bandwidth savings store the tables in bf16
      (see prepare_tables) -- then no per-call cast happens at all.
    tables_prenormalized: skip the in-kernel L2 row normalization (use with
      prepare_tables for repeated eval/inference scoring).
    fuse_gather: None = auto (fuse when the f32 tables fit comfortably in VMEM).
    """
    inp = jnp.asarray(inp)
    heads = inp[:, 0].astype(jnp.int32)
    tails = inp[:, 1].astype(jnp.int32)
    rels = inp[:, 2].astype(jnp.int32)
    batch = int(inp.shape[0])
    ent_count, dim = int(ent_emb.shape[0]), int(ent_emb.shape[1])
    rel_count = int(rel_emb.shape[0])
    normalize = not tables_prenormalized

    ceiling, row_cap, hard_cap = _vmem_plan()
    d_pad = _round_up(dim, _LANE)                       # lane-padded width in VMEM

    tab_itemsize = jnp.dtype(ent_emb.dtype).itemsize
    tab_sub = _sublane_multiple(ent_emb.dtype)
    table_resident = 2 * (_round_up(ent_count, tab_sub) +
                          _round_up(rel_count, tab_sub)) * d_pad * tab_itemsize

    if fuse_gather is None:
        fuse_gather = (
            tab_itemsize == 4
            and jnp.dtype(rel_emb.dtype).itemsize == 4
            and table_resident <= ceiling // 2
            and batch <= 16384          # scalar-prefetch index arrays live in SMEM
        )

    if fuse_gather:
        sub = _SUBLANE                                  # per-tile state is f32
        staging = 3 * 8 * d_pad * 4                     # (8, D) staging scratch x3
        per_row = 2 * _LANE * 4                         # (tb, 1) out block, lane-padded, x2 bufs
        budget = max(per_row * sub, ceiling - table_resident - staging)
    else:
        stream_dtype = (jnp.dtype(gather_dtype) if gather_dtype is not None
                        else jnp.dtype(ent_emb.dtype))
        sub = _sublane_multiple(stream_dtype)
        per_row = 3 * 2 * d_pad * stream_dtype.itemsize + 2 * _LANE * 4
        budget = ceiling

    if tb is None:
        tb, n_tiles = _choose_tiling(batch, per_row, budget, row_cap, sub)
    else:
        tb = _round_up(max(int(tb), sub), sub)
        tb = min(tb, _round_up(batch, sub))
        n_tiles = _cdiv(batch, tb)

    b_pad = n_tiles * tb
    if b_pad != batch:
        # Pad the cheap index vectors; index 0 is valid, padded scores are sliced off.
        pad = b_pad - batch
        heads = jnp.pad(heads, (0, pad))
        tails = jnp.pad(tails, (0, pad))
        rels = jnp.pad(rels, (0, pad))

    if fuse_gather:
        est = table_resident + staging + tb * per_row
    else:
        est = tb * per_row
    vmem_limit = int(min(hard_cap, max(est + (8 << 20), 32 << 20)))
    compiler_params = pltpu.CompilerParams(
        dimension_semantics=("parallel",), vmem_limit_bytes=vmem_limit)

    if fuse_gather:
        kernel = functools.partial(_transe_fused_kernel, p_norm=p_norm, tb=tb,
                                   normalize=normalize)
        grid_spec = pltpu.PrefetchScalarGridSpec(
            num_scalar_prefetch=3,
            grid=(n_tiles,),
            in_specs=[
                # Full-array blocks + constant index_map: DMA'd once, kept resident.
                pl.BlockSpec((ent_count, dim), lambda i, hi, ti, ri: (0, 0)),
                pl.BlockSpec((rel_count, dim), lambda i, hi, ti, ri: (0, 0)),
            ],
            out_specs=pl.BlockSpec((tb, 1), lambda i, hi, ti, ri: (i, 0)),
            scratch_shapes=[pltpu.VMEM((8, dim), jnp.float32)] * 3,
        )
        out = pl.pallas_call(
            kernel,
            out_shape=jax.ShapeDtypeStruct((b_pad, 1), jnp.float32),
            grid_spec=grid_spec,
            compiler_params=compiler_params,
            interpret=interpret,
        )(heads, tails, rels, ent_emb, rel_emb)
    else:
        # Streaming fallback (large / packed tables): XLA row gather outside, any
        # down-cast applied AFTER the gather (never a full-table cast).
        h_raw = jnp.take(ent_emb, heads, axis=0)
        t_raw = jnp.take(ent_emb, tails, axis=0)
        r_raw = jnp.take(rel_emb, rels, axis=0)
        if gather_dtype is not None and jnp.dtype(gather_dtype) != h_raw.dtype:
            sd = jnp.dtype(gather_dtype)
            h_raw, t_raw, r_raw = h_raw.astype(sd), t_raw.astype(sd), r_raw.astype(sd)
        kernel = functools.partial(_transe_streaming_kernel, p_norm=p_norm,
                                   normalize=normalize)
        out = pl.pallas_call(
            kernel,
            out_shape=jax.ShapeDtypeStruct((b_pad, 1), jnp.float32),
            grid=(n_tiles,),
            in_specs=[pl.BlockSpec((tb, dim), lambda i: (i, 0))] * 3,
            out_specs=pl.BlockSpec((tb, 1), lambda i: (i, 0)),
            compiler_params=compiler_params,
            interpret=interpret,
        )(h_raw, t_raw, r_raw)

    return out[:batch, 0]


# ----------------------------------------------------------------------------- params & reference


def prepare_tables(ent_emb, rel_emb, dtype=None):
    """Normalize the tables once (and optionally store them in a narrower dtype,
    e.g. bf16) for repeated scoring; use with tables_prenormalized=True."""
    def n(w):
        return w / jnp.maximum(jnp.linalg.norm(w, axis=-1, keepdims=True), 1e-12)
    ent_n, rel_n = n(ent_emb), n(rel_emb)
    if dtype is not None:
        ent_n, rel_n = ent_n.astype(dtype), rel_n.astype(dtype)
    return ent_n, rel_n


def init_transe_params(key, ent_count, rel_count, dim):
    """Matches the PyTorch __init__ (uniform +-6/sqrt(dim), relation table normalized)."""
    bound = 6.0 / (dim ** 0.5)
    k_ent, k_rel = jax.random.split(key)
    ent = jax.random.uniform(k_ent, (ent_count, dim), jnp.float32, -bound, bound)
    rel = jax.random.uniform(k_rel, (rel_count, dim), jnp.float32, -bound, bound)
    rel = rel / jnp.maximum(jnp.linalg.norm(rel, axis=-1, keepdims=True), 1e-12)
    return ent, rel


def transe_reference(inp, ent_emb, rel_emb, p_norm=2):
    """Pure-JAX reference mirroring the PyTorch forward."""
    def norm_rows(w):
        return w / jnp.maximum(jnp.linalg.norm(w, axis=-1, keepdims=True), 1e-12)
    ent_n, rel_n = norm_rows(ent_emb), norm_rows(rel_emb)
    inp_t = inp.T
    h, t, r = ent_n[inp_t[0]], ent_n[inp_t[1]], rel_n[inp_t[2]]
    return jnp.linalg.norm(h + r - t, ord=p_norm, axis=-1)


# ----------------------------------------------------------------------------- demo / test


if __name__ == "__main__":
    ENT_COUNT, REL_COUNT, DIM, BATCH = 32, 8, 200, 16   # dim=200 is the module default

    key = jax.random.PRNGKey(0)
    k_param, k_h, k_t, k_r = jax.random.split(key, 4)
    ent_emb, rel_emb = init_transe_params(k_param, ENT_COUNT, REL_COUNT, DIM)

    heads = jax.random.randint(k_h, (BATCH,), 0, ENT_COUNT, dtype=jnp.int32)
    tails = jax.random.randint(k_t, (BATCH,), 0, ENT_COUNT, dtype=jnp.int32)
    rels = jax.random.randint(k_r, (BATCH,), 0, REL_COUNT, dtype=jnp.int32)
    inp = jnp.stack([heads, tails, rels], axis=1)            # (batch, 3)

    ref2 = transe_reference(inp, ent_emb, rel_emb, p_norm=2)

    # 1) Fused-gather path (tables resident in VMEM), f32, p=2 -- exact-parity path.
    s2 = jax.block_until_ready(transe_forward(inp, ent_emb, rel_emb, p_norm=2))
    assert s2.shape == (BATCH,)
    assert jnp.allclose(s2, ref2, atol=1e-5, rtol=1e-4), (s2, ref2)

    # 2) Ragged batch (pad-to-tile path), fused, p=1.
    inp13 = inp[:13]
    s1 = jax.block_until_ready(transe_forward(inp13, ent_emb, rel_emb, p_norm=1))
    ref1 = transe_reference(inp13, ent_emb, rel_emb, p_norm=1)
    assert s1.shape == (13,)
    assert jnp.allclose(s1, ref1, atol=1e-5, rtol=1e-4), (s1, ref1)

    # 3) Integer p=3 norm (VALU-multiply powers, single EUP root), fused.
    s3 = jax.block_until_ready(transe_forward(inp, ent_emb, rel_emb, p_norm=3))
    ref3 = transe_reference(inp, ent_emb, rel_emb, p_norm=3)
    assert jnp.allclose(s3, ref3, atol=1e-4, rtol=1e-3), (s3, ref3)

    # 4) Streaming path (forced), rows cast to bf16 AFTER the gather (no table cast).
    sbf = jax.block_until_ready(
        transe_forward(inp, ent_emb, rel_emb, p_norm=2,
                       fuse_gather=False, gather_dtype=jnp.bfloat16))
    assert jnp.allclose(sbf, ref2, atol=5e-2, rtol=5e-2), (sbf, ref2)

    # 5) Pre-normalized bf16 tables (eval/inference caching path; streams bf16 rows,
    #    skips in-kernel normalization).
    ent_n16, rel_n16 = prepare_tables(ent_emb, rel_emb, dtype=jnp.bfloat16)
    sp = jax.block_until_ready(
        transe_forward(inp, ent_n16, rel_n16, p_norm=2, tables_prenormalized=True))
    assert jnp.allclose(sp, ref2, atol=5e-2, rtol=5e-2), (sp, ref2)

    print("KERNEL_OK")
</pallas_src>

<mosaic_0001>
module attributes {stable_mosaic.version = 11 : i64} {
  func.func @_transe_fused_kernel(%arg0: i32, %arg1: memref<16xi32, #tpu.memory_space<smem>>, %arg2: memref<16xi32, #tpu.memory_space<smem>>, %arg3: memref<16xi32, #tpu.memory_space<smem>>, %arg4: memref<32x200xf32, #tpu.memory_space<vmem>>, %arg5: memref<8x200xf32, #tpu.memory_space<vmem>>, %arg6: memref<8x1xf32, #tpu.memory_space<vmem>>, %arg7: memref<8x200xf32, #tpu.memory_space<vmem>>, %arg8: memref<8x200xf32, #tpu.memory_space<vmem>>, %arg9: memref<8x200xf32, #tpu.memory_space<vmem>>) attributes {dimension_semantics = [#tpu.dimension_semantics<parallel>], iteration_bounds = array<i64: 2>, scalar_prefetch = 3 : i64, scratch_operands = 3 : i64, tpu.core_type = #tpu.core_type<tc>, window_params = [{pipeline_mode = #tpu.pipeline_mode<synchronous>, transform_indices = @transform_0, window_bounds = array<i64: 32, 200>}, {pipeline_mode = #tpu.pipeline_mode<synchronous>, transform_indices = @transform_1, window_bounds = array<i64: 8, 200>}, {transform_indices = @transform_2, window_bounds = array<i64: 8, 1>}]} {
    %c8_i32 = arith.constant 8 : i32
    %0 = arith.muli %arg0, %c8_i32 : i32
    %c0_i32 = arith.constant 0 : i32
    %c8_i32_0 = arith.constant 8 : i32
    %1 = arith.muli %c0_i32, %c8_i32_0 : i32
    %2 = arith.addi %0, %1 : i32
    %c0_i32_1 = arith.constant 0 : i32
    %3 = arith.addi %2, %c0_i32_1 : i32
    %4 = arith.index_cast %3 : i32 to index
    %5 = memref.load %arg1[%4] : memref<16xi32, #tpu.memory_space<smem>>
    %6 = arith.index_cast %5 : i32 to index
    %c0 = arith.constant 0 : index
    %7 = vector.load %arg4[%6, %c0] : memref<32x200xf32, #tpu.memory_space<vmem>>, vector<1x200xf32>
    %c0_2 = arith.constant 0 : index
    %c0_3 = arith.constant 0 : index
    %8 = vector.load %arg7[%c0_2, %c0_3] : memref<8x200xf32, #tpu.memory_space<vmem>>, vector<1x200xf32>
    tpu.vector_store %arg7[%c0_2, %c0_3], %7 {strides = array<i32>} : memref<8x200xf32, #tpu.memory_space<vmem>>, vector<1x200xf32>,
    %c0_i32_4 = arith.constant 0 : i32
    %9 = arith.addi %2, %c0_i32_4 : i32
    %10 = arith.index_cast %9 : i32 to index
    %11 = memref.load %arg2[%10] : memref<16xi32, #tpu.memory_space<smem>>
    %12 = arith.index_cast %11 : i32 to index
    %c0_5 = arith.constant 0 : index
    %13 = vector.load %arg4[%12, %c0_5] : memref<32x200xf32, #tpu.memory_space<vmem>>, vector<1x200xf32>
    %c0_6 = arith.constant 0 : index
    %c0_7 = arith.constant 0 : index
    %14 = vector.load %arg8[%c0_6, %c0_7] : memref<8x200xf32, #tpu.memory_space<vmem>>, vector<1x200xf32>
    tpu.vector_store %arg8[%c0_6, %c0_7], %13 {strides = array<i32>} : memref<8x200xf32, #tpu.memory_space<vmem>>, vector<1x200xf32>,
    %c0_i32_8 = arith.constant 0 : i32
    %15 = arith.addi %2, %c0_i32_8 : i32
    %16 = arith.index_cast %15 : i32 to index
    %17 = memref.load %arg3[%16] : memref<16xi32, #tpu.memory_space<smem>>
    %18 = arith.index_cast %17 : i32 to index
    %c0_9 = arith.constant 0 : index
    %19 = vector.load %arg5[%18, %c0_9] : memref<8x200xf32, #tpu.memory_space<vmem>>, vector<1x200xf32>
    %c0_10 = arith.constant 0 : index
    %c0_11 = arith.constant 0 : index
    %20 = vector.load %arg9[%c0_10, %c0_11] : memref<8x200xf32, #tpu.memory_space<vmem>>, vector<1x200xf32>
    tpu.vector_store %arg9[%c0_10, %c0_11], %19 {strides = array<i32>} : memref<8x200xf32, #tpu.memory_space<vmem>>, vector<1x200xf32>,
    %c1_i32 = arith.constant 1 : i32
    %21 = arith.addi %2, %c1_i32 : i32
    %22 = arith.index_cast %21 : i32 to index
    %23 = memref.load %arg1[%22] : memref<16xi32, #tpu.memory_space<smem>>
    %24 = arith.index_cast %23 : i32 to index
    %c0_12 = arith.constant 0 : index
    %25 = vector.load %arg4[%24, %c0_12] : memref<32x200xf32, #tpu.memory_space<vmem>>, vector<1x200xf32>
    %c1 = arith.constant 1 : index
    %c0_13 = arith.constant 0 : index
    %26 = vector.load %arg7[%c1, %c0_13] : memref<8x200xf32, #tpu.memory_space<vmem>>, vector<1x200xf32>
    tpu.vector_store %arg7[%c1, %c0_13], %25 {strides = array<i32>} : memref<8x200xf32, #tpu.memory_space<vmem>>, vector<1x200xf32>,
    %c1_i32_14 = arith.constant 1 : i32
    %27 = arith.addi %2, %c1_i32_14 : i32
    %28 = arith.index_cast %27 : i32 to index
    %29 = memref.load %arg2[%28] : memref<16xi32, #tpu.memory_space<smem>>
    %30 = arith.index_cast %29 : i32 to index
    %c0_15 = arith.constant 0 : index
    %31 = vector.load %arg4[%30, %c0_15] : memref<32x200xf32, #tpu.memory_space<vmem>>, vector<1x200xf32>
    %c1_16 = arith.constant 1 : index
    %c0_17 = arith.constant 0 : index
    %32 = vector.load %arg8[%c1_16, %c0_17] : memref<8x200xf32, #tpu.memory_space<vmem>>, vector<1x200xf32>
    tpu.vector_store %arg8[%c1_16, %c0_17], %31 {strides = array<i32>} : memref<8x200xf32, #tpu.memory_space<vmem>>, vector<1x200xf32>,
    %c1_i32_18 = arith.constant 1 : i32
    %33 = arith.addi %2, %c1_i32_18 : i32
    %34 = arith.index_cast %33 : i32 to index
    %35 = memref.load %arg3[%34] : memref<16xi32, #tpu.memory_space<smem>>
    %36 = arith.index_cast %35 : i32 to index
    %c0_19 = arith.constant 0 : index
    %37 = vector.load %arg5[%36, %c0_19] : memref<8x200xf32, #tpu.memory_space<vmem>>, vector<1x200xf32>
    %c1_20 = arith.constant 1 : index
    %c0_21 = arith.constant 0 : index
    %38 = vector.load %arg9[%c1_20, %c0_21] : memref<8x200xf32, #tpu.memory_space<vmem>>, vector<1x200xf32>
    tpu.vector_store %arg9[%c1_20, %c0_21], %37 {strides = array<i32>} : memref<8x200xf32, #tpu.memory_space<vmem>>, vector<1x200xf32>,
    %c2_i32 = arith.constant 2 : i32
    %39 = arith.addi %2, %c2_i32 : i32
    %40 = arith.index_cast %39 : i32 to index
    %41 = memref.load %arg1[%40] : memref<16xi32, #tpu.memory_space<smem>>
    %42 = arith.index_cast %41 : i32 to index
    %c0_22 = arith.constant 0 : index
    %43 = vector.load %arg4[%42, %c0_22] : memref<32x200xf32, #tpu.memory_space<vmem>>, vector<1x200xf32>
    %c2 = arith.constant 2 : index
    %c0_23 = arith.constant 0 : index
    %44 = vector.load %arg7[%c2, %c0_23] : memref<8x200xf32, #tpu.memory_space<vmem>>, vector<1x200xf32>
    tpu.vector_store %arg7[%c2, %c0_23], %43 {strides = array<i32>} : memref<8x200xf32, #tpu.memory_space<vmem>>, vector<1x200xf32>,
    %c2_i32_24 = arith.constant 2 : i32
    %45 = arith.addi %2, %c2_i32_24 : i32
    %46 = arith.index_cast %45 : i32 to index
    %47 = memref.load %arg2[%46] : memref<16xi32, #tpu.memory_space<smem>>
    %48 = arith.index_cast %47 : i32 to index
    %c0_25 = arith.constant 0 : index
    %49 = vector.load %arg4[%48, %c0_25] : memref<32x200xf32, #tpu.memory_space<vmem>>, vector<1x200xf32>
    %c2_26 = arith.constant 2 : index
    %c0_27 = arith.constant 0 : index
    %50 = vector.load %arg8[%c2_26, %c0_27] : memref<8x200xf32, #tpu.memory_space<vmem>>, vector<1x200xf32>
    tpu.vector_store %arg8[%c2_26, %c0_27], %49 {strides = array<i32>} : memref<8x200xf32, #tpu.memory_space<vmem>>, vector<1x200xf32>,
    %c2_i32_28 = arith.constant 2 : i32
    %51 = arith.addi %2, %c2_i32_28 : i32
    %52 = arith.index_cast %51 : i32 to index
    %53 = memref.load %arg3[%52] : memref<16xi32, #tpu.memory_space<smem>>
    %54 = arith.index_cast %53 : i32 to index
    %c0_29 = arith.constant 0 : index
    %55 = vector.load %arg5[%54, %c0_29] : memref<8x200xf32, #tpu.memory_space<vmem>>, vector<1x200xf32>
    %c2_30 = arith.constant 2 : index
    %c0_31 = arith.constant 0 : index
    %56 = vector.load %arg9[%c2_30, %c0_31] : memref<8x200xf32, #tpu.memory_space<vmem>>, vector<1x200xf32>
    tpu.vector_store %arg9[%c2_30, %c0_31], %55 {strides = array<i32>} : memref<8x200xf32, #tpu.memory_space<vmem>>, vector<1x200xf32>,
    %c3_i32 = arith.constant 3 : i32
    %57 = arith.addi %2, %c3_i32 : i32
    %58 = arith.index_cast %57 : i32 to index
    %59 = memref.load %arg1[%58] : memref<16xi32, #tpu.memory_space<smem>>
    %60 = arith.index_cast %59 : i32 to index
    %c0_32 = arith.constant 0 : index
    %61 = vector.load %arg4[%60, %c0_32] : memref<32x200xf32, #tpu.memory_space<vmem>>, vector<1x200xf32>
    %c3 = arith.constant 3 : index
    %c0_33 = arith.constant 0 : index
    %62 = vector.load %arg7[%c3, %c0_33] : memref<8x200xf32, #tpu.memory_space<vmem>>, vector<1x200xf32>
    tpu.vector_store %arg7[%c3, %c0_33], %61 {strides = array<i32>} : memref<8x200xf32, #tpu.memory_space<vmem>>, vector<1x200xf32>,
    %c3_i32_34 = arith.constant 3 : i32
    %63 = arith.addi %2, %c3_i32_34 : i32
    %64 = arith.index_cast %63 : i32 to index
    %65 = memref.load %arg2[%64] : memref<16xi32, #tpu.memory_space<smem>>
    %66 = arith.index_cast %65 : i32 to index
    %c0_35 = arith.constant 0 : index
    %67 = vector.load %arg4[%66, %c0_35] : memref<32x200xf32, #tpu.memory_space<vmem>>, vector<1x200xf32>
    %c3_36 = arith.constant 3 : index
    %c0_37 = arith.constant 0 : index
    %68 = vector.load %arg8[%c3_36, %c0_37] : memref<8x200xf32, #tpu.memory_space<vmem>>, vector<1x200xf32>
    tpu.vector_store %arg8[%c3_36, %c0_37], %67 {strides = array<i32>} : memref<8x200xf32, #tpu.memory_space<vmem>>, vector<1x200xf32>,
    %c3_i32_38 = arith.constant 3 : i32
    %69 = arith.addi %2, %c3_i32_38 : i32
    %70 = arith.index_cast %69 : i32 to index
    %71 = memref.load %arg3[%70] : memref<16xi32, #tpu.memory_space<smem>>
    %72 = arith.index_cast %71 : i32 to index
    %c0_39 = arith.constant 0 : index
    %73 = vector.load %arg5[%72, %c0_39] : memref<8x200xf32, #tpu.memory_space<vmem>>, vector<1x200xf32>
    %c3_40 = arith.constant 3 : index
    %c0_41 = arith.constant 0 : index
    %74 = vector.load %arg9[%c3_40, %c0_41] : memref<8x200xf32, #tpu.memory_space<vmem>>, vector<1x200xf32>
    tpu.vector_store %arg9[%c3_40, %c0_41], %73 {strides = array<i32>} : memref<8x200xf32, #tpu.memory_space<vmem>>, vector<1x200xf32>,
    %c4_i32 = arith.constant 4 : i32
    %75 = arith.addi %2, %c4_i32 : i32
    %76 = arith.index_cast %75 : i32 to index
    %77 = memref.load %arg1[%76] : memref<16xi32, #tpu.memory_space<smem>>
    %78 = arith.index_cast %77 : i32 to index
    %c0_42 = arith.constant 0 : index
    %79 = vector.load %arg4[%78, %c0_42] : memref<32x200xf32, #tpu.memory_space<vmem>>, vector<1x200xf32>
    %c4 = arith.constant 4 : index
    %c0_43 = arith.constant 0 : index
    %80 = vector.load %arg7[%c4, %c0_43] : memref<8x200xf32, #tpu.memory_space<vmem>>, vector<1x200xf32>
    tpu.vector_store %arg7[%c4, %c0_43], %79 {strides = array<i32>} : memref<8x200xf32, #tpu.memory_space<vmem>>, vector<1x200xf32>,
    %c4_i32_44 = arith.constant 4 : i32
    %81 = arith.addi %2, %c4_i32_44 : i32
    %82 = arith.index_cast %81 : i32 to index
    %83 = memref.load %arg2[%82] : memref<16xi32, #tpu.memory_space<smem>>
    %84 = arith.index_cast %83 : i32 to index
    %c0_45 = arith.constant 0 : index
    %85 = vector.load %arg4[%84, %c0_45] : memref<32x200xf32, #tpu.memory_space<vmem>>, vector<1x200xf32>
    %c4_46 = arith.constant 4 : index
    %c0_47 = arith.constant 0 : index
    %86 = vector.load %arg8[%c4_46, %c0_47] : memref<8x200xf32, #tpu.memory_space<vmem>>, vector<1x200xf32>
    tpu.vector_store %arg8[%c4_46, %c0_47], %85 {strides = array<i32>} : memref<8x200xf32, #tpu.memory_space<vmem>>, vector<1x200xf32>,
    %c4_i32_48 = arith.constant 4 : i32
    %87 = arith.addi %2, %c4_i32_48 : i32
    %88 = arith.index_cast %87 : i32 to index
    %89 = memref.load %arg3[%88] : memref<16xi32, #tpu.memory_space<smem>>
    %90 = arith.index_cast %89 : i32 to index
    %c0_49 = arith.constant 0 : index
    %91 = vector.load %arg5[%90, %c0_49] : memref<8x200xf32, #tpu.memory_space<vmem>>, vector<1x200xf32>
    %c4_50 = arith.constant 4 : index
    %c0_51 = arith.constant 0 : index
    %92 = vector.load %arg9[%c4_50, %c0_51] : memref<8x200xf32, #tpu.memory_space<vmem>>, vector<1x200xf32>
    tpu.vector_store %arg9[%c4_50, %c0_51], %91 {strides = array<i32>} : memref<8x200xf32, #tpu.memory_space<vmem>>, vector<1x200xf32>,
    %c5_i32 = arith.constant 5 : i32
    %93 = arith.addi %2, %c5_i32 : i32
    %94 = arith.index_cast %93 : i32 to index
    %95 = memref.load %arg1[%94] : memref<16xi32, #tpu.memory_space<smem>>
    %96 = arith.index_cast %95 : i32 to index
    %c0_52 = arith.constant 0 : index
    %97 = vector.load %arg4[%96, %c0_52] : memref<32x200xf32, #tpu.memory_space<vmem>>, vector<1x200xf32>
    %c5 = arith.constant 5 : index
    %c0_53 = arith.constant 0 : index
    %98 = vector.load %arg7[%c5, %c0_53] : memref<8x200xf32, #tpu.memory_space<vmem>>, vector<1x200xf32>
    tpu.vector_store %arg7[%c5, %c0_53], %97 {strides = array<i32>} : memref<8x200xf32, #tpu.memory_space<vmem>>, vector<1x200xf32>,
    %c5_i32_54 = arith.constant 5 : i32
    %99 = arith.addi %2, %c5_i32_54 : i32
    %100 = arith.index_cast %99 : i32 to index
    %101 = memref.load %arg2[%100] : memref<16xi32, #tpu.memory_space<smem>>
    %102 = arith.index_cast %101 : i32 to index
    %c0_55 = arith.constant 0 : index
    %103 = vector.load %arg4[%102, %c0_55] : memref<32x200xf32, #tpu.memory_space<vmem>>, vector<1x200xf32>
    %c5_56 = arith.constant 5 : index
    %c0_57 = arith.constant 0 : index
    %104 = vector.load %arg8[%c5_56, %c0_57] : memref<8x200xf32, #tpu.memory_space<vmem>>, vector<1x200xf32>
    tpu.vector_store %arg8[%c5_56, %c0_57], %103 {strides = array<i32>} : memref<8x200xf32, #tpu.memory_space<vmem>>, vector<1x200xf32>,
    %c5_i32_58 = arith.constant 5 : i32
    %105 = arith.addi %2, %c5_i32_58 : i32
    %106 = arith.index_cast %105 : i32 to index
    %107 = memref.load %arg3[%106] : memref<16xi32, #tpu.memory_space<smem>>
    %108 = arith.index_cast %107 : i32 to index
    %c0_59 = arith.constant 0 : index
    %109 = vector.load %arg5[%108, %c0_59] : memref<8x200xf32, #tpu.memory_space<vmem>>, vector<1x200xf32>
    %c5_60 = arith.constant 5 : index
    %c0_61 = arith.constant 0 : index
    %110 = vector.load %arg9[%c5_60, %c0_61] : memref<8x200xf32, #tpu.memory_space<vmem>>, vector<1x200xf32>
    tpu.vector_store %arg9[%c5_60, %c0_61], %109 {strides = array<i32>} : memref<8x200xf32, #tpu.memory_space<vmem>>, vector<1x200xf32>,
    %c6_i32 = arith.constant 6 : i32
    %111 = arith.addi %2, %c6_i32 : i32
    %112 = arith.index_cast %111 : i32 to index
    %113 = memref.load %arg1[%112] : memref<16xi32, #tpu.memory_space<smem>>
    %114 = arith.index_cast %113 : i32 to index
    %c0_62 = arith.constant 0 : index
    %115 = vector.load %arg4[%114, %c0_62] : memref<32x200xf32, #tpu.memory_space<vmem>>, vector<1x200xf32>
    %c6 = arith.constant 6 : index
    %c0_63 = arith.constant 0 : index
    %116 = vector.load %arg7[%c6, %c0_63] : memref<8x200xf32, #tpu.memory_space<vmem>>, vector<1x200xf32>
    tpu.vector_store %arg7[%c6, %c0_63], %115 {strides = array<i32>} : memref<8x200xf32, #tpu.memory_space<vmem>>, vector<1x200xf32>,
    %c6_i32_64 = arith.constant 6 : i32
    %117 = arith.addi %2, %c6_i32_64 : i32
    %118 = arith.index_cast %117 : i32 to index
    %119 = memref.load %arg2[%118] : memref<16xi32, #tpu.memory_space<smem>>
    %120 = arith.index_cast %119 : i32 to index
    %c0_65 = arith.constant 0 : index
    %121 = vector.load %arg4[%120, %c0_65] : memref<32x200xf32, #tpu.memory_space<vmem>>, vector<1x200xf32>
    %c6_66 = arith.constant 6 : index
    %c0_67 = arith.constant 0 : index
    %122 = vector.load %arg8[%c6_66, %c0_67] : memref<8x200xf32, #tpu.memory_space<vmem>>, vector<1x200xf32>
    tpu.vector_store %arg8[%c6_66, %c0_67], %121 {strides = array<i32>} : memref<8x200xf32, #tpu.memory_space<vmem>>, vector<1x200xf32>,
    %c6_i32_68 = arith.constant 6 : i32
    %123 = arith.addi %2, %c6_i32_68 : i32
    %124 = arith.index_cast %123 : i32 to index
    %125 = memref.load %arg3[%124] : memref<16xi32, #tpu.memory_space<smem>>
    %126 = arith.index_cast %125 : i32 to index
    %c0_69 = arith.constant 0 : index
    %127 = vector.load %arg5[%126, %c0_69] : memref<8x200xf32, #tpu.memory_space<vmem>>, vector<1x200xf32>
    %c6_70 = arith.constant 6 : index
    %c0_71 = arith.constant 0 : index
    %128 = vector.load %arg9[%c6_70, %c0_71] : memref<8x200xf32, #tpu.memory_space<vmem>>, vector<1x200xf32>
    tpu.vector_store %arg9[%c6_70, %c0_71], %127 {strides = array<i32>} : memref<8x200xf32, #tpu.memory_space<vmem>>, vector<1x200xf32>,
    %c7_i32 = arith.constant 7 : i32
    %129 = arith.addi %2, %c7_i32 : i32
    %130 = arith.index_cast %129 : i32 to index
    %131 = memref.load %arg1[%130] : memref<16xi32, #tpu.memory_space<smem>>
    %132 = arith.index_cast %131 : i32 to index
    %c0_72 = arith.constant 0 : index
    %133 = vector.load %arg4[%132, %c0_72] : memref<32x200xf32, #tpu.memory_space<vmem>>, vector<1x200xf32>
    %c7 = arith.constant 7 : index
    %c0_73 = arith.constant 0 : index
    %134 = vector.load %arg7[%c7, %c0_73] : memref<8x200xf32, #tpu.memory_space<vmem>>, vector<1x200xf32>
    tpu.vector_store %arg7[%c7, %c0_73], %133 {strides = array<i32>} : memref<8x200xf32, #tpu.memory_space<vmem>>, vector<1x200xf32>,
    %c7_i32_74 = arith.constant 7 : i32
    %135 = arith.addi %2, %c7_i32_74 : i32
    %136 = arith.index_cast %135 : i32 to index
    %137 = memref.load %arg2[%136] : memref<16xi32, #tpu.memory_space<smem>>
    %138 = arith.index_cast %137 : i32 to index
    %c0_75 = arith.constant 0 : index
    %139 = vector.load %arg4[%138, %c0_75] : memref<32x200xf32, #tpu.memory_space<vmem>>, vector<1x200xf32>
    %c7_76 = arith.constant 7 : index
    %c0_77 = arith.constant 0 : index
    %140 = vector.load %arg8[%c7_76, %c0_77] : memref<8x200xf32, #tpu.memory_space<vmem>>, vector<1x200xf32>
    tpu.vector_store %arg8[%c7_76, %c0_77], %139 {strides = array<i32>} : memref<8x200xf32, #tpu.memory_space<vmem>>, vector<1x200xf32>,
    %c7_i32_78 = arith.constant 7 : i32
    %141 = arith.addi %2, %c7_i32_78 : i32
    %142 = arith.index_cast %141 : i32 to index
    %143 = memref.load %arg3[%142] : memref<16xi32, #tpu.memory_space<smem>>
    %144 = arith.index_cast %143 : i32 to index
    %c0_79 = arith.constant 0 : index
    %145 = vector.load %arg5[%144, %c0_79] : memref<8x200xf32, #tpu.memory_space<vmem>>, vector<1x200xf32>
    %c7_80 = arith.constant 7 : index
    %c0_81 = arith.constant 0 : index
    %146 = vector.load %arg9[%c7_80, %c0_81] : memref<8x200xf32, #tpu.memory_space<vmem>>, vector<1x200xf32>
    tpu.vector_store %arg9[%c7_80, %c0_81], %145 {strides = array<i32>} : memref<8x200xf32, #tpu.memory_space<vmem>>, vector<1x200xf32>,
    %c0_82 = arith.constant 0 : index
    %c0_83 = arith.constant 0 : index
    %147 = vector.load %arg7[%c0_82, %c0_83] : memref<8x200xf32, #tpu.memory_space<vmem>>, vector<8x200xf32>
    %c0_84 = arith.constant 0 : index
    %c0_85 = arith.constant 0 : index
    %148 = vector.load %arg8[%c0_84, %c0_85] : memref<8x200xf32, #tpu.memory_space<vmem>>, vector<8x200xf32>
    %c0_86 = arith.constant 0 : index
    %c0_87 = arith.constant 0 : index
    %149 = vector.load %arg9[%c0_86, %c0_87] : memref<8x200xf32, #tpu.memory_space<vmem>>, vector<8x200xf32>
    %150 = arith.mulf %147, %147 : vector<8x200xf32>
    %cst = arith.constant dense<0.000000e+00> : vector<8xf32>
    %151 = vector.multi_reduction <add>, %150, %cst [1] : vector<8x200xf32> to vector<8xf32>
    %152 = vector.shape_cast %151 : vector<8xf32> to vector<8x1xf32>
    %cst_88 = arith.constant 1.000000e-24 : f32
    %153 = vector.broadcast %cst_88 : f32 to vector<8x1xf32>
    %154 = arith.maximumf %152, %153 : vector<8x1xf32>
    %155 = math.rsqrt %154 : vector<8x1xf32>
    %156 = vector.broadcast %155 : vector<8x1xf32> to vector<8x200xf32>
    %157 = arith.mulf %147, %156 : vector<8x200xf32>
    %158 = arith.mulf %148, %148 : vector<8x200xf32>
    %cst_89 = arith.constant dense<0.000000e+00> : vector<8xf32>
    %159 = vector.multi_reduction <add>, %158, %cst_89 [1] : vector<8x200xf32> to vector<8xf32>
    %160 = vector.shape_cast %159 : vector<8xf32> to vector<8x1xf32>
    %cst_90 = arith.constant 1.000000e-24 : f32
    %161 = vector.broadcast %cst_90 : f32 to vector<8x1xf32>
    %162 = arith.maximumf %160, %161 : vector<8x1xf32>
    %163 = math.rsqrt %162 : vector<8x1xf32>
    %164 = vector.broadcast %163 : vector<8x1xf32> to vector<8x200xf32>
    %165 = arith.mulf %148, %164 : vector<8x200xf32>
    %166 = arith.mulf %149, %149 : vector<8x200xf32>
    %cst_91 = arith.constant dense<0.000000e+00> : vector<8xf32>
    %167 = vector.multi_reduction <add>, %166, %cst_91 [1] : vector<8x200xf32> to vector<8xf32>
    %168 = vector.shape_cast %167 : vector<8xf32> to vector<8x1xf32>
    %cst_92 = arith.constant 1.000000e-24 : f32
    %169 = vector.broadcast %cst_92 : f32 to vector<8x1xf32>
    %170 = arith.maximumf %168, %169 : vector<8x1xf32>
    %171 = math.rsqrt %170 : vector<8x1xf32>
    %172 = vector.broadcast %171 : vector<8x1xf32> to vector<8x200xf32>
    %173 = arith.mulf %149, %172 : vector<8x200xf32>
    %174 = arith.addf %157, %173 : vector<8x200xf32>
    %175 = arith.subf %174, %165 : vector<8x200xf32>
    %176 = arith.mulf %175, %175 : vector<8x200xf32>
    %cst_93 = arith.constant dense<0.000000e+00> : vector<8xf32>
    %177 = vector.multi_reduction <add>, %176, %cst_93 [1] : vector<8x200xf32> to vector<8xf32>
    %178 = vector.shape_cast %177 : vector<8xf32> to vector<8x1xf32>
    %179 = math.sqrt %178 : vector<8x1xf32>
    %c8_i32_94 = arith.constant 8 : i32
    %180 = arith.muli %c0_i32, %c8_i32_94 : i32
    %181 = tpu.assume_multiple %180, 8 : i32
    %182 = arith.index_cast %181 : i32 to index
    %c0_95 = arith.constant 0 : index
    %183 = vector.load %arg6[%182, %c0_95] : memref<8x1xf32, #tpu.memory_space<vmem>>, vector<8x1xf32>
    tpu.vector_store %arg6[%182, %c0_95], %179 {strides = array<i32>} : memref<8x1xf32, #tpu.memory_space<vmem>>, vector<8x1xf32>,
    %c1_i32_96 = arith.constant 1 : i32
    return
  }
  func.func @transform_0(%arg0: i32, %arg1: memref<16xi32, #tpu.memory_space<smem>>, %arg2: memref<16xi32, #tpu.memory_space<smem>>, %arg3: memref<16xi32, #tpu.memory_space<smem>>) -> (i32, i32) {
    %c0_i32 = arith.constant 0 : i32
    %c0_i32_0 = arith.constant 0 : i32
    %c0_i32_1 = arith.constant 0 : i32
    return %c0_i32, %c0_i32_0 : i32, i32
  }
  func.func @transform_1(%arg0: i32, %arg1: memref<16xi32, #tpu.memory_space<smem>>, %arg2: memref<16xi32, #tpu.memory_space<smem>>, %arg3: memref<16xi32, #tpu.memory_space<smem>>) -> (i32, i32) {
    %c0_i32 = arith.constant 0 : i32
    %c0_i32_0 = arith.constant 0 : i32
    %c0_i32_1 = arith.constant 0 : i32
    return %c0_i32, %c0_i32_0 : i32, i32
  }
  func.func @transform_2(%arg0: i32, %arg1: memref<16xi32, #tpu.memory_space<smem>>, %arg2: memref<16xi32, #tpu.memory_space<smem>>, %arg3: memref<16xi32, #tpu.memory_space<smem>>) -> (i32, i32) {
    %c0_i32 = arith.constant 0 : i32
    %c0_i32_0 = arith.constant 0 : i32
    return %arg0, %c0_i32 : i32, i32
  }
}

</mosaic_0001>

<llo_original>
// kernel: tpu_custom_call.1
$region0: #{tpu_custom_call.1}
  #allocation0 [shape = 'u32[]', space=smem, size = 0x4, offset = 0x4, fixed_abs, tag = 'smem constant byte address 0x4 - core index']
  #allocation1 [shape = 'u32[144,128]{1,0:T(1,128)}', space=vmem, size = 0x12000, scoped, tag = 'internal scratch']
  #allocation2 [shape = 'f32[8,200]{1,0:T(8,128)}', space=vmem, size = 0x2000, scoped, tag = 'scratch operand']
  #allocation3 [shape = 'f32[8,200]{1,0:T(8,128)}', space=vmem, size = 0x2000, scoped, tag = 'scratch operand']
  #allocation4 [shape = 'f32[8,200]{1,0:T(8,128)}', space=vmem, size = 0x2000, scoped, tag = 'scratch operand']
  #allocation5 [shape = 's32[1]{0}', space=sflag, size = 0x4, scoped, tag = 'scoped memory for tpu_custom_call.1']
  #allocation6 [shape = 'u8[512]{0}', space=smem, size = 0x200, scoped, tag = 'prefetched SMEM operand 0']
  #allocation7 [shape = 'u8[512]{0}', space=smem, size = 0x200, scoped, tag = 'prefetched SMEM operand 1']
  #allocation8 [shape = 'u8[512]{0}', space=smem, size = 0x200, scoped, tag = 'prefetched SMEM operand 2']
  %s0 = inlined_call_operand.hbm [shape: s32[16], index: 0, kind: input, shape index: {}]
  %s1 = inlined_call_operand.vmem [shape: s32[16], index: 1, kind: input, shape index: {}]
  %s2 = inlined_call_operand.vmem [shape: s32[16], index: 2, kind: input, shape index: {}]
  %s3 = inlined_call_operand.hbm [shape: f32[32,200], index: 3, kind: input, shape index: {}]
  %s4 = inlined_call_operand.hbm [shape: f32[8,200], index: 4, kind: input, shape index: {}]
  %s5 = inlined_call_operand.vmem [shape: f32[16,1], index: 5, kind: output, shape index: {}]
  %s6 = sld [smem:[#allocation0]]
  $region49: #{tpu_custom_call.1} parent=0
    _
  %s8 = ssub.s32 1, %s6
  %s9 = scalar_select 0, %s8, %s6
  %11 = dma.hbm_to_smem %s0, 16, [#allocation6], [#allocation5]
  %s12 = sshll.u32 %s1, 4
  %s13 = int_to_ptr.vmem [resolvable:$true] %s12
  %15 = dma.vmem_to_smem %s13, 16, [#allocation7], [#allocation5]
  %s16 = sshll.u32 %s2, 4
  %s17 = int_to_ptr.vmem [resolvable:$true] %s16
  %19 = dma.vmem_to_smem %s17, 16, [#allocation8], [#allocation5]
  %20 = dma.done [#allocation5], 48
  %21 = sfence
  $region1: #{tpu_custom_call.1} parent=0
    #allocation9 [shape = 'u8[32768]{0}', space=vmem, size = 0x8000, scoped, tag = 'input window, operand 3, single buffered']
    #allocation10 [shape = 's32[2]{0}', space=sflag, size = 0x8, scoped, tag = 'scoped memory for tpu_custom_call.1']
    #allocation11 [shape = 'u8[8192]{0}', space=vmem, size = 0x2000, scoped, tag = 'input window, operand 4, single buffered']
    #allocation12 [shape = 's32[1]{0}', space=sflag, size = 0x4, scoped, tag = 'scoped memory for tpu_custom_call.1']
    %22 = vsyncpa [#allocation10], 0
    %23 = vsyncpa [#allocation12], 0
    loop: start=0, step=1, limit=4
    $region2: #{tpu_custom_call.1} parent=1 // loop_pre_header
      _
    $region3: #{tpu_custom_call.1} parent=1 // loop_header
      %s25 = sphi 0, %s29
      %p26 = scmp.ge.s32.totalorder %s25, 4
      %s33 = sphi 0, %s33
      %s35 = sphi 0, %s33
      %s36 = sphi 0, %s35
      %s50 = sphi 0, %s36
      %s54 = sphi 0, %s54
      %s56 = sphi 0, %s54
      %s57 = sphi 0, %s56
      %s71 = sphi 0, %s57
      %s77 = sphi 0, %s79
      %s80 = sphi 0, %s77
      %s81 = sphi 0, %s80
      %s97 = sphi 0, %s81
    $region4: #{tpu_custom_call.1} parent=1 // loop_header_branch
      %28 = sbr.rel (%p26) target = $region8
    $region5: #{tpu_custom_call.1} parent=1 // loop_body
      %s30 = ssub.s32 %s25, 1
      %s31 = ssub.s32 %s25, 2
      %s32 = sadd.s32 %s25, 1
      %s34 = sadd.s32 %s33, 1
      %p37 = scmp.eq.s32.totalorder %s25, 1
      %p38 = scmp.ne.s32.totalorder %s33, %s35
      %p39 = scmp.eq.s32.totalorder %s25, 0
      %p40 = por %p38, %p39
      %p41 = scmp.ne.s32.totalorder %s33, %s35
      %p42 = scmp.eq.s32.totalorder %s30, 1
      %p43 = por %p41, %p42
      %p44 = scmp.ne.s32.totalorder %s35, %s36
      %p45 = scmp.eq.s32.totalorder %s30, 0
      %p46 = por %p44, %p45
      %p47 = scmp.ne.s32.totalorder %s35, %s36
      %p48 = scmp.eq.s32.totalorder %s31, 1
      %p49 = por %p47, %p48
      %p51 = scmp.ne.s32.totalorder %s36, %s50
      %p52 = scmp.eq.s32.totalorder %s31, 0
      %p53 = por %p51, %p52
      %s55 = sadd.s32 %s54, 1
      %p58 = scmp.eq.s32.totalorder %s25, 1
      %p59 = scmp.ne.s32.totalorder %s54, %s56
      %p60 = scmp.eq.s32.totalorder %s25, 0
      %p61 = por %p59, %p60
      %p62 = scmp.ne.s32.totalorder %s54, %s56
      %p63 = scmp.eq.s32.totalorder %s30, 1
      %p64 = por %p62, %p63
      %p65 = scmp.ne.s32.totalorder %s56, %s57
      %p66 = scmp.eq.s32.totalorder %s30, 0
      %p67 = por %p65, %p66
      %p68 = scmp.ne.s32.totalorder %s56, %s57
      %p69 = scmp.eq.s32.totalorder %s31, 1
      %p70 = por %p68, %p69
      %p72 = scmp.ne.s32.totalorder %s57, %s71
      %p73 = scmp.eq.s32.totalorder %s31, 0
      %p74 = por %p72, %p73
      %s75 = ssub.s32 %s25, %s32
      %p76 = scmp.eq.s32.totalorder %s75, 0
      %s78 = sadd.s32 %s77, 1
      %s79 = scalar_select %p76, %s77, %s78
      %p82 = pneg %p76
      %p83 = scmp.eq.s32.totalorder %s25, 1
      %p84 = por %p82, %p83
      %p85 = scmp.ne.s32.totalorder %s77, %s80
      %p86 = scmp.eq.s32.totalorder %s25, 0
      %p87 = por %p85, %p86
      %p88 = scmp.ne.s32.totalorder %s77, %s80
      %p89 = scmp.eq.s32.totalorder %s30, 1
      %p90 = por %p88, %p89
      %p91 = scmp.ne.s32.totalorder %s80, %s81
      %p92 = scmp.eq.s32.totalorder %s30, 0
      %p93 = por %p91, %p92
      %p94 = scmp.ne.s32.totalorder %s80, %s81
      %p95 = scmp.eq.s32.totalorder %s31, 1
      %p96 = por %p94, %p95
      %p98 = scmp.ne.s32.totalorder %s81, %s97
      %p99 = scmp.eq.s32.totalorder %s31, 0
      %p100 = por %p98, %p99
      %p101 = scmp.le.s32.totalorder 1, %s25
      %p102 = scmp.lt.s32.totalorder %s25, 3
      %p103 = pnand %p101, %p102
      %p104 = pneg %p103
      // Predicated region
      $region9: #{tpu_custom_call.1} parent=5 // pred_check
        _
      $region10: #{tpu_custom_call.1} parent=5 // pred_check_branch
        %106 = sbr.rel (%p103) target = $region12
      $region11: #{tpu_custom_call.1} parent=5 // pred_region
        %s107 = ssub.s32 %s25, 1
        // Predicated region
        $region13: #{tpu_custom_call.1} parent=11 // pred_check
          %p108 = pneg %p46
        $region14: #{tpu_custom_call.1} parent=11 // pred_check_branch
          %110 = sbr.rel (%p108) target = $region16
        $region15: #{tpu_custom_call.1} parent=11 // pred_region
          %s112 = ssub.s32 1024, 1024
          %113 = vsyncadd [#allocation10], %s112
          %s114 = sshll.u32 [#allocation9], 4
          %s115 = int_to_ptr.vmem [resolvable:$true] %s114
          %120 = dma.hbm_to_vmem [thread:$0]  %s3, 1024, %s115, [#allocation10], 256, 256, 16
        $region16: #{tpu_custom_call.1} parent=11 // pred_fallthru
          _
        // Predicated region
        $region17: #{tpu_custom_call.1} parent=11 // pred_check
          %p121 = pneg %p67
        $region18: #{tpu_custom_call.1} parent=11 // pred_check_branch
          %123 = sbr.rel (%p121) target = $region20
        $region19: #{tpu_custom_call.1} parent=11 // pred_region
          %s125 = ssub.s32 256, 256
          %126 = vsyncadd [#allocation12], %s125
          %s128 = sshll.u32 [#allocation11], 4
          %s129 = int_to_ptr.vmem [resolvable:$true] %s128
          %131 = dma.hbm_to_vmem [thread:$0]  %s4, 256, %s129, [#allocation12]
        $region20: #{tpu_custom_call.1} parent=11 // pred_fallthru
          _
      $region12: #{tpu_custom_call.1} parent=5 // pred_fallthru
        _
      %p132 = scmp.lt.s32.totalorder %s25, 2
      // Predicated region
      $region21: #{tpu_custom_call.1} parent=5 // pred_check
        %p133 = pneg %p132
      $region22: #{tpu_custom_call.1} parent=5 // pred_check_branch
        %135 = sbr.rel (%p133) target = $region24
      $region23: #{tpu_custom_call.1} parent=5 // pred_region
        _
      $region24: #{tpu_custom_call.1} parent=5 // pred_fallthru
        _
      %p136 = scmp.le.s32.totalorder 1, %s25
      %p137 = scmp.lt.s32.totalorder %s25, 3
      %p138 = pnand %p136, %p137
      %p139 = pneg %p138
      // Predicated region
      $region25: #{tpu_custom_call.1} parent=5 // pred_check
        _
      $region26: #{tpu_custom_call.1} parent=5 // pred_check_branch
        %141 = sbr.rel (%p138) target = $region28
      $region27: #{tpu_custom_call.1} parent=5 // pred_region
        %s142 = ssub.s32 %s25, 1
        // Predicated region
        $region29: #{tpu_custom_call.1} parent=27 // pred_check
          %p143 = pneg %p46
        $region30: #{tpu_custom_call.1} parent=27 // pred_check_branch
          %145 = sbr.rel (%p143) target = $region32
        $region31: #{tpu_custom_call.1} parent=27 // pred_region
          %146 = dma.done [#allocation10], 1024
        $region32: #{tpu_custom_call.1} parent=27 // pred_fallthru
          _
        // Predicated region
        $region33: #{tpu_custom_call.1} parent=27 // pred_check
          %p147 = pneg %p67
        $region34: #{tpu_custom_call.1} parent=27 // pred_check_branch
          %149 = sbr.rel (%p147) target = $region36
        $region35: #{tpu_custom_call.1} parent=27 // pred_region
          %150 = dma.done [#allocation12], 256
        $region36: #{tpu_custom_call.1} parent=27 // pred_fallthru
          _
        %p151 = pneg %p46
        %p152 = pneg %p43
        %p153 = pneg %p67
        %p154 = pneg %p64
        %p155 = pneg %p93
        %p156 = pneg %p90
        %p157 = scmp.lt.s32.totalorder %s30, 1
        %s158 = scalar_select %p157, %s30, 1
        %s159 = smul.addr %s158, 8
        %s160 = scalar_lea.vmem %s5, %s159
        %p161 = scmp.lt.s32.totalorder %s30, 1
        %s162 = scalar_select %p161, %s30, 1
        %s163 = smul.addr %s162, 8
        %s164 = scalar_lea.vmem %s5, %s163
        %s165 = smul.u32 %s30, 8
        %s166 = sld [smem:[#allocation6 + %s165]]
        %s167 = sshra.s32 %s166, 3
        %s168 = sand.u32 %s166, 7
        %s169 = sshra.s32 %s166, 3
        %s170 = sand.u32 %s166, 7
        %s171 = smul.u32 %s167, 2
        %s172 = smul.u32 %s171, 8
        %s173 = sadd.s32 %s172, %s170
        %s174 = scalar_lea.vmem [#allocation9], %s173
        %v175 = vld [vmem:[%s174] ss:$8 sm:$0x3]
        %v176 = vlaneseq
        %vm177 = vcmp.ge.s32.totalorder %v176, 0
        %vm178 = vcmp.lt.s32.totalorder %v176, 200
        %vm179 = vmand %vm177, %vm178
        %180 = vst.msk [vmem:[#allocation2] ss:$8 sm:$0x3] %vm179, %v175
        %181 = vst.msk [vmem:[#allocation2] ss:$8 sm:$0x0] %vm179, %v175
        %s182 = sld [smem:[#allocation7 + %s165]]
        %s183 = sshra.s32 %s182, 3
        %s184 = sand.u32 %s182, 7
        %s185 = sshra.s32 %s182, 3
        %s186 = sand.u32 %s182, 7
        %s187 = smul.u32 %s183, 2
        %s188 = smul.u32 %s187, 8
        %s189 = sadd.s32 %s188, %s186
        %s190 = scalar_lea.vmem [#allocation9], %s189
        %v191 = vld [vmem:[%s190] ss:$8 sm:$0x3]
        %192 = vst.msk [vmem:[#allocation3] ss:$8 sm:$0x3] %vm179, %v191
        %193 = vst.msk [vmem:[#allocation3] ss:$8 sm:$0x0] %vm179, %v191
        %s194 = sld [smem:[#allocation8 + %s165]]
        %s195 = sshra.s32 %s194, 3
        %s196 = sand.u32 %s194, 7
        %s197 = sshra.s32 %s194, 3
        %s198 = sand.u32 %s194, 7
        %s199 = smul.u32 %s195, 2
        %s200 = smul.u32 %s199, 8
        %s201 = sadd.s32 %s200, %s198
        %s202 = scalar_lea.vmem [#allocation11], %s201
        %v203 = vld [vmem:[%s202] ss:$8 sm:$0x3]
        %204 = vst.msk [vmem:[#allocation4] ss:$8 sm:$0x3] %vm179, %v203
        %205 = vst.msk [vmem:[#allocation4] ss:$8 sm:$0x0] %vm179, %v203
        %s206 = sadd.s32 %s165, 1
        %s207 = sld [smem:[#allocation6 + %s206]]
        %s208 = sshra.s32 %s207, 3
        %s209 = sand.u32 %s207, 7
        %s210 = sshra.s32 %s207, 3
        %s211 = sand.u32 %s207, 7
        %s212 = smul.u32 %s208, 2
        %s213 = smul.u32 %s212, 8
        %s214 = sadd.s32 %s213, %s211
        %s215 = scalar_lea.vmem [#allocation9], %s214
        %v216 = vld [vmem:[%s215] ss:$8 sm:$0x3]
        %s217 = scalar_lea.vmem [#allocation2], 1
        %218 = vst.msk [vmem:[%s217] ss:$8 sm:$0x3] %vm179, %v216
        %219 = vst.msk [vmem:[%s217] ss:$8 sm:$0x0] %vm179, %v216
        %s220 = sld [smem:[#allocation7 + %s206]]
        %s221 = sshra.s32 %s220, 3
        %s222 = sand.u32 %s220, 7
        %s223 = sshra.s32 %s220, 3
        %s224 = sand.u32 %s220, 7
        %s225 = smul.u32 %s221, 2
        %s226 = smul.u32 %s225, 8
        %s227 = sadd.s32 %s226, %s224
        %s228 = scalar_lea.vmem [#allocation9], %s227
        %v229 = vld [vmem:[%s228] ss:$8 sm:$0x3]
        %s230 = scalar_lea.vmem [#allocation3], 1
        %231 = vst.msk [vmem:[%s230] ss:$8 sm:$0x3] %vm179, %v229
        %232 = vst.msk [vmem:[%s230] ss:$8 sm:$0x0] %vm179, %v229
        %s233 = sld [smem:[#allocation8 + %s206]]
        %s234 = sshra.s32 %s233, 3
        %s235 = sand.u32 %s233, 7
        %s236 = sshra.s32 %s233, 3
        %s237 = sand.u32 %s233, 7
        %s238 = smul.u32 %s234, 2
        %s239 = smul.u32 %s238, 8
        %s240 = sadd.s32 %s239, %s237
        %s241 = scalar_lea.vmem [#allocation11], %s240
        %v242 = vld [vmem:[%s241] ss:$8 sm:$0x3]
        %s243 = scalar_lea.vmem [#allocation4], 1
        %244 = vst.msk [vmem:[%s243] ss:$8 sm:$0x3] %vm179, %v242
        %245 = vst.msk [vmem:[%s243] ss:$8 sm:$0x0] %vm179, %v242
        %s246 = sadd.s32 %s165, 2
        %s247 = sld [smem:[#allocation6 + %s246]]
        %s248 = sshra.s32 %s247, 3
        %s249 = sand.u32 %s247, 7
        %s250 = sshra.s32 %s247, 3
        %s251 = sand.u32 %s247, 7
        %s252 = smul.u32 %s248, 2
        %s253 = smul.u32 %s252, 8
        %s254 = sadd.s32 %s253, %s251
        %s255 = scalar_lea.vmem [#allocation9], %s254
        %v256 = vld [vmem:[%s255] ss:$8 sm:$0x3]
        %s257 = scalar_lea.vmem [#allocation2], 2
        %258 = vst.msk [vmem:[%s257] ss:$8 sm:$0x3] %vm179, %v256
        %259 = vst.msk [vmem:[%s257] ss:$8 sm:$0x0] %vm179, %v256
        %s260 = sld [smem:[#allocation7 + %s246]]
        %s261 = sshra.s32 %s260, 3
        %s262 = sand.u32 %s260, 7
        %s263 = sshra.s32 %s260, 3
        %s264 = sand.u32 %s260, 7
        %s265 = smul.u32 %s261, 2
        %s266 = smul.u32 %s265, 8
        %s267 = sadd.s32 %s266, %s264
        %s268 = scalar_lea.vmem [#allocation9], %s267
        %v269 = vld [vmem:[%s268] ss:$8 sm:$0x3]
        %s270 = scalar_lea.vmem [#allocation3], 2
        %271 = vst.msk [vmem:[%s270] ss:$8 sm:$0x3] %vm179, %v269
        %272 = vst.msk [vmem:[%s270] ss:$8 sm:$0x0] %vm179, %v269
        %s273 = sld [smem:[#allocation8 + %s246]]
        %s274 = sshra.s32 %s273, 3
        %s275 = sand.u32 %s273, 7
        %s276 = sshra.s32 %s273, 3
        %s277 = sand.u32 %s273, 7
        %s278 = smul.u32 %s274, 2
        %s279 = smul.u32 %s278, 8
        %s280 = sadd.s32 %s279, %s277
        %s281 = scalar_lea.vmem [#allocation11], %s280
        %v282 = vld [vmem:[%s281] ss:$8 sm:$0x3]
        %s283 = scalar_lea.vmem [#allocation4], 2
        %284 = vst.msk [vmem:[%s283] ss:$8 sm:$0x3] %vm179, %v282
        %285 = vst.msk [vmem:[%s283] ss:$8 sm:$0x0] %vm179, %v282
        %s286 = sadd.s32 %s165, 3
        %s287 = sld [smem:[#allocation6 + %s286]]
        %s288 = sshra.s32 %s287, 3
        %s289 = sand.u32 %s287, 7
        %s290 = sshra.s32 %s287, 3
        %s291 = sand.u32 %s287, 7
        %s292 = smul.u32 %s288, 2
        %s293 = smul.u32 %s292, 8
        %s294 = sadd.s32 %s293, %s291
        %s295 = scalar_lea.vmem [#allocation9], %s294
        %v296 = vld [vmem:[%s295] ss:$8 sm:$0x3]
        %s297 = scalar_lea.vmem [#allocation2], 3
        %298 = vst.msk [vmem:[%s297] ss:$8 sm:$0x3] %vm179, %v296
        %299 = vst.msk [vmem:[%s297] ss:$8 sm:$0x0] %vm179, %v296
        %s300 = sld [smem:[#allocation7 + %s286]]
        %s301 = sshra.s32 %s300, 3
        %s302 = sand.u32 %s300, 7
        %s303 = sshra.s32 %s300, 3
        %s304 = sand.u32 %s300, 7
        %s305 = smul.u32 %s301, 2
        %s306 = smul.u32 %s305, 8
        %s307 = sadd.s32 %s306, %s304
        %s308 = scalar_lea.vmem [#allocation9], %s307
        %v309 = vld [vmem:[%s308] ss:$8 sm:$0x3]
        %s310 = scalar_lea.vmem [#allocation3], 3
        %311 = vst.msk [vmem:[%s310] ss:$8 sm:$0x3] %vm179, %v309
        %312 = vst.msk [vmem:[%s310] ss:$8 sm:$0x0] %vm179, %v309
        %s313 = sld [smem:[#allocation8 + %s286]]
        %s314 = sshra.s32 %s313, 3
        %s315 = sand.u32 %s313, 7
        %s316 = sshra.s32 %s313, 3
        %s317 = sand.u32 %s313, 7
        %s318 = smul.u32 %s314, 2
        %s319 = smul.u32 %s318, 8
        %s320 = sadd.s32 %s319, %s317
        %s321 = scalar_lea.vmem [#allocation11], %s320
        %v322 = vld [vmem:[%s321] ss:$8 sm:$0x3]
        %s323 = scalar_lea.vmem [#allocation4], 3
        %324 = vst.msk [vmem:[%s323] ss:$8 sm:$0x3] %vm179, %v322
        %325 = vst.msk [vmem:[%s323] ss:$8 sm:$0x0] %vm179, %v322
        %s326 = sadd.s32 %s165, 4
        %s327 = sld [smem:[#allocation6 + %s326]]
        %s328 = sshra.s32 %s327, 3
        %s329 = sand.u32 %s327, 7
        %s330 = sshra.s32 %s327, 3
        %s331 = sand.u32 %s327, 7
        %s332 = smul.u32 %s328, 2
        %s333 = smul.u32 %s332, 8
        %s334 = sadd.s32 %s333, %s331
        %s335 = scalar_lea.vmem [#allocation9], %s334
        %v336 = vld [vmem:[%s335] ss:$8 sm:$0x3]
        %s337 = scalar_lea.vmem [#allocation2], 4
        %338 = vst.msk [vmem:[%s337] ss:$8 sm:$0x3] %vm179, %v336
        %339 = vst.msk [vmem:[%s337] ss:$8 sm:$0x0] %vm179, %v336
        %s340 = sld [smem:[#allocation7 + %s326]]
        %s341 = sshra.s32 %s340, 3
        %s342 = sand.u32 %s340, 7
        %s343 = sshra.s32 %s340, 3
        %s344 = sand.u32 %s340, 7
        %s345 = smul.u32 %s341, 2
        %s346 = smul.u32 %s345, 8
        %s347 = sadd.s32 %s346, %s344
        %s348 = scalar_lea.vmem [#allocation9], %s347
        %v349 = vld [vmem:[%s348] ss:$8 sm:$0x3]
        %s350 = scalar_lea.vmem [#allocation3], 4
        %351 = vst.msk [vmem:[%s350] ss:$8 sm:$0x3] %vm179, %v349
        %352 = vst.msk [vmem:[%s350] ss:$8 sm:$0x0] %vm179, %v349
        %s353 = sld [smem:[#allocation8 + %s326]]
        %s354 = sshra.s32 %s353, 3
        %s355 = sand.u32 %s353, 7
        %s356 = sshra.s32 %s353, 3
        %s357 = sand.u32 %s353, 7
        %s358 = smul.u32 %s354, 2
        %s359 = smul.u32 %s358, 8
        %s360 = sadd.s32 %s359, %s357
        %s361 = scalar_lea.vmem [#allocation11], %s360
        %v362 = vld [vmem:[%s361] ss:$8 sm:$0x3]
        %s363 = scalar_lea.vmem [#allocation4], 4
        %364 = vst.msk [vmem:[%s363] ss:$8 sm:$0x3] %vm179, %v362
        %365 = vst.msk [vmem:[%s363] ss:$8 sm:$0x0] %vm179, %v362
        %s366 = sadd.s32 %s165, 5
        %s367 = sld [smem:[#allocation6 + %s366]]
        %s368 = sshra.s32 %s367, 3
        %s369 = sand.u32 %s367, 7
        %s370 = sshra.s32 %s367, 3
        %s371 = sand.u32 %s367, 7
        %s372 = smul.u32 %s368, 2
        %s373 = smul.u32 %s372, 8
        %s374 = sadd.s32 %s373, %s371
        %s375 = scalar_lea.vmem [#allocation9], %s374
        %v376 = vld [vmem:[%s375] ss:$8 sm:$0x3]
        %s377 = scalar_lea.vmem [#allocation2], 5
        %378 = vst.msk [vmem:[%s377] ss:$8 sm:$0x3] %vm179, %v376
        %379 = vst.msk [vmem:[%s377] ss:$8 sm:$0x0] %vm179, %v376
        %s380 = sld [smem:[#allocation7 + %s366]]
        %s381 = sshra.s32 %s380, 3
        %s382 = sand.u32 %s380, 7
        %s383 = sshra.s32 %s380, 3
        %s384 = sand.u32 %s380, 7
        %s385 = smul.u32 %s381, 2
        %s386 = smul.u32 %s385, 8
        %s387 = sadd.s32 %s386, %s384
        %s388 = scalar_lea.vmem [#allocation9], %s387
        %v389 = vld [vmem:[%s388] ss:$8 sm:$0x3]
        %s390 = scalar_lea.vmem [#allocation3], 5
        %391 = vst.msk [vmem:[%s390] ss:$8 sm:$0x3] %vm179, %v389
        %392 = vst.msk [vmem:[%s390] ss:$8 sm:$0x0] %vm179, %v389
        %s393 = sld [smem:[#allocation8 + %s366]]
        %s394 = sshra.s32 %s393, 3
        %s395 = sand.u32 %s393, 7
        %s396 = sshra.s32 %s393, 3
        %s397 = sand.u32 %s393, 7
        %s398 = smul.u32 %s394, 2
        %s399 = smul.u32 %s398, 8
        %s400 = sadd.s32 %s399, %s397
        %s401 = scalar_lea.vmem [#allocation11], %s400
        %v402 = vld [vmem:[%s401] ss:$8 sm:$0x3]
        %s403 = scalar_lea.vmem [#allocation4], 5
        %404 = vst.msk [vmem:[%s403] ss:$8 sm:$0x3] %vm179, %v402
        %405 = vst.msk [vmem:[%s403] ss:$8 sm:$0x0] %vm179, %v402
        %s406 = sadd.s32 %s165, 6
        %s407 = sld [smem:[#allocation6 + %s406]]
        %s408 = sshra.s32 %s407, 3
        %s409 = sand.u32 %s407, 7
        %s410 = sshra.s32 %s407, 3
        %s411 = sand.u32 %s407, 7
        %s412 = smul.u32 %s408, 2
        %s413 = smul.u32 %s412, 8
        %s414 = sadd.s32 %s413, %s411
        %s415 = scalar_lea.vmem [#allocation9], %s414
        %v416 = vld [vmem:[%s415] ss:$8 sm:$0x3]
        %s417 = scalar_lea.vmem [#allocation2], 6
        %418 = vst.msk [vmem:[%s417] ss:$8 sm:$0x3] %vm179, %v416
        %419 = vst.msk [vmem:[%s417] ss:$8 sm:$0x0] %vm179, %v416
        %s420 = sld [smem:[#allocation7 + %s406]]
        %s421 = sshra.s32 %s420, 3
        %s422 = sand.u32 %s420, 7
        %s423 = sshra.s32 %s420, 3
        %s424 = sand.u32 %s420, 7
        %s425 = smul.u32 %s421, 2
        %s426 = smul.u32 %s425, 8
        %s427 = sadd.s32 %s426, %s424
        %s428 = scalar_lea.vmem [#allocation9], %s427
        %v429 = vld [vmem:[%s428] ss:$8 sm:$0x3]
        %s430 = scalar_lea.vmem [#allocation3], 6
        %431 = vst.msk [vmem:[%s430] ss:$8 sm:$0x3] %vm179, %v429
        %432 = vst.msk [vmem:[%s430] ss:$8 sm:$0x0] %vm179, %v429
        %s433 = sld [smem:[#allocation8 + %s406]]
        %s434 = sshra.s32 %s433, 3
        %s435 = sand.u32 %s433, 7
        %s436 = sshra.s32 %s433, 3
        %s437 = sand.u32 %s433, 7
        %s438 = smul.u32 %s434, 2
        %s439 = smul.u32 %s438, 8
        %s440 = sadd.s32 %s439, %s437
        %s441 = scalar_lea.vmem [#allocation11], %s440
        %v442 = vld [vmem:[%s441] ss:$8 sm:$0x3]
        %s443 = scalar_lea.vmem [#allocation4], 6
        %444 = vst.msk [vmem:[%s443] ss:$8 sm:$0x3] %vm179, %v442
        %445 = vst.msk [vmem:[%s443] ss:$8 sm:$0x0] %vm179, %v442
        %s446 = sadd.s32 %s165, 7
        %s447 = sld [smem:[#allocation6 + %s446]]
        %s448 = sshra.s32 %s447, 3
        %s449 = sand.u32 %s447, 7
        %s450 = sshra.s32 %s447, 3
        %s451 = sand.u32 %s447, 7
        %s452 = smul.u32 %s448, 2
        %s453 = smul.u32 %s452, 8
        %s454 = sadd.s32 %s453, %s451
        %s455 = scalar_lea.vmem [#allocation9], %s454
        %v456 = vld [vmem:[%s455] ss:$8 sm:$0x3]
        %s457 = scalar_lea.vmem [#allocation2], 7
        %458 = vst.msk [vmem:[%s457] ss:$8 sm:$0x3] %vm179, %v456
        %459 = vst.msk [vmem:[%s457] ss:$8 sm:$0x0] %vm179, %v456
        %s460 = sld [smem:[#allocation7 + %s446]]
        %s461 = sshra.s32 %s460, 3
        %s462 = sand.u32 %s460, 7
        %s463 = sshra.s32 %s460, 3
        %s464 = sand.u32 %s460, 7
        %s465 = smul.u32 %s461, 2
        %s466 = smul.u32 %s465, 8
        %s467 = sadd.s32 %s466, %s464
        %s468 = scalar_lea.vmem [#allocation9], %s467
        %v469 = vld [vmem:[%s468] ss:$8 sm:$0x3]
        %s470 = scalar_lea.vmem [#allocation3], 7
        %471 = vst.msk [vmem:[%s470] ss:$8 sm:$0x3] %vm179, %v469
        %472 = vst.msk [vmem:[%s470] ss:$8 sm:$0x0] %vm179, %v469
        %s473 = sld [smem:[#allocation8 + %s446]]
        %s474 = sshra.s32 %s473, 3
        %s475 = sand.u32 %s473, 7
        %s476 = sshra.s32 %s473, 3
        %s477 = sand.u32 %s473, 7
        %s478 = smul.u32 %s474, 2
        %s479 = smul.u32 %s478, 8
        %s480 = sadd.s32 %s479, %s477
        %s481 = scalar_lea.vmem [#allocation11], %s480
        %v482 = vld [vmem:[%s481] ss:$8 sm:$0x3]
        %s483 = scalar_lea.vmem [#allocation4], 7
        %484 = vst.msk [vmem:[%s483] ss:$8 sm:$0x3] %vm179, %v482
        %485 = vst.msk [vmem:[%s483] ss:$8 sm:$0x0] %vm179, %v482
        %v486 = vld [vmem:[#allocation2] sm:$0xff]
        %v487 = vld [vmem:[#allocation2 + $0x8] sm:$0xff]
        %v488 = vld [vmem:[#allocation3] sm:$0xff]
        %v489 = vld [vmem:[#allocation3 + $0x8] sm:$0xff]
        %v490 = vld [vmem:[#allocation4] sm:$0xff]
        %v491 = vld [vmem:[#allocation4 + $0x8] sm:$0xff]
        %v492 = vmul.f32 %v486, %v486
        %v493 = vmul.f32 %v487, %v487
        %vm494 = vcmask 588800
        %v495 = vsel %vm494, %v493, 0.0
        %v496 = vadd.f32 %v492, %v495
        %497 = vadd.xlane.f32.xlu0 %v496
        %v498 = vpop.xlane.xlu0 %497
        %v499 = vmax.f32 %v498, 1e-24
        %v500 = vrsqrt.pop %v499
        %v501 = vmul.f32 %v486, %v500
        %v502 = vmul.f32 %v487, %v500
        %v503 = vmul.f32 %v488, %v488
        %v504 = vmul.f32 %v489, %v489
        %v505 = vsel %vm494, %v504, 0.0
        %v506 = vadd.f32 %v503, %v505
        %507 = vadd.xlane.f32.xlu0 %v506
        %v508 = vpop.xlane.xlu0 %507
        %v509 = vmax.f32 %v508, 1e-24
        %v510 = vrsqrt.pop %v509
        %v511 = vmul.f32 %v488, %v510
        %v512 = vmul.f32 %v489, %v510
        %v513 = vmul.f32 %v490, %v490
        %v514 = vmul.f32 %v491, %v491
        %v515 = vsel %vm494, %v514, 0.0
        %v516 = vadd.f32 %v513, %v515
        %517 = vadd.xlane.f32.xlu0 %v516
        %v518 = vpop.xlane.xlu0 %517
        %v519 = vmax.f32 %v518, 1e-24
        %v520 = vrsqrt.pop %v519
        %v521 = vmul.f32 %v490, %v520
        %v522 = vmul.f32 %v491, %v520
        %v523 = vadd.f32 %v501, %v521
        %v524 = vadd.f32 %v502, %v522
        %v525 = vsub.f32 %v523, %v511
        %v526 = vsub.f32 %v524, %v512
        %v527 = vmul.f32 %v525, %v525
        %v528 = vmul.f32 %v526, %v526
        %v529 = vsel %vm494, %v528, 0.0
        %v530 = vadd.f32 %v527, %v529
        %531 = vadd.xlane.f32.xlu0 %v530
        %v532 = vpop.xlane.xlu0 %531
        %v533 = vrsqrt.pop %v532
        %v534 = vmul.f32 %v532, %v533
        %vm535 = vcmp.eq.f32.partialorder %v532, inf
        %v536 = vsel %vm535, %v532, %v534
        %vm537 = vcmp.eq.f32.partialorder %v532, 0.0
        %v538 = vand.u32 %v532, 2147483648
        %v539 = vsel %vm537, %v538, %v536
        %vm540 = vcmask 7168
        %541 = vst.msk [vmem:[%s164] sm:$0xff] %vm540, %v539
        %p542 = scmp.lt.s32.totalorder %s30, 1
        %s543 = scalar_select %p542, %s30, 1
        %s544 = smul.addr %s543, 8
        %s545 = scalar_lea.vmem %s5, %s544
        // Predicated region
        $region37: #{tpu_custom_call.1} parent=27 // pred_check
          %p546 = pneg %p90
        $region38: #{tpu_custom_call.1} parent=27 // pred_check_branch
          %548 = sbr.rel (%p546) target = $region40
        $region39: #{tpu_custom_call.1} parent=27 // pred_region
          _
        $region40: #{tpu_custom_call.1} parent=27 // pred_fallthru
          _
      $region28: #{tpu_custom_call.1} parent=5 // pred_fallthru
        _
      %p549 = scmp.le.s32.totalorder 2, %s25
      // Predicated region
      $region41: #{tpu_custom_call.1} parent=5 // pred_check
        %p550 = pneg %p549
      $region42: #{tpu_custom_call.1} parent=5 // pred_check_branch
        %552 = sbr.rel (%p550) target = $region44
      $region43: #{tpu_custom_call.1} parent=5 // pred_region
        %s553 = ssub.s32 %s25, 2
        // Predicated region
        $region45: #{tpu_custom_call.1} parent=43 // pred_check
          %p554 = pneg %p96
        $region46: #{tpu_custom_call.1} parent=43 // pred_check_branch
          %556 = sbr.rel (%p554) target = $region48
        $region47: #{tpu_custom_call.1} parent=43 // pred_region
          %p557 = scmp.lt.s32.totalorder %s31, 1
          %s558 = scalar_select %p557, %s31, 1
          %s559 = smul.addr %s558, 8
          %s560 = scalar_lea.vmem %s5, %s559
        $region48: #{tpu_custom_call.1} parent=43 // pred_fallthru
          _
      $region44: #{tpu_custom_call.1} parent=5 // pred_fallthru
        _
    $region6: #{tpu_custom_call.1} parent=1 // loop_footer
      %s29 = sadd.s32 1, %s25
    $region7: #{tpu_custom_call.1} parent=1 // loop_footer_branch
      %24 = sbr.rel target = $region3
    $region8: #{tpu_custom_call.1} parent=1 // loop_exit
      _
    %561 = vsyncpa [#allocation10], 1
    %s562 = scalar_lea.sflag [#allocation10], 1
    %563 = vsyncpa %s562, 1
    %564 = vsyncpa [#allocation12], 1

</llo_original>
